<compile_context>
chip_gen: v6e
topology: v6e:2x2x1
jax: 0.10.0
libtpu: 0.0.40
codegen_flags: <defaults>
</compile_context>

<pallas_src>
import functools

import jax
import jax.numpy as jnp
from jax import lax
from jax.experimental import pallas as pl
from jax.experimental.pallas import tpu as pltpu

EPS = 1e-5  # torch InstanceNorm2d default eps (affine=False => no scale/shift)


def _channel_group_sum(t, W, C):
    """t: (R, W*C).  Lane w*C + c of the result holds sum_{w'} t[:, w'*C + c]
    (the per-channel total, already broadcast back to every lane of that
    channel).  Uses only circular XLU lane rolls -- no reshapes, no cross-
    sublane relayout."""
    if (W & (W - 1)) == 0:            # power of two: log2(W) doubling rolls
        shift = C
        while shift < W * C:
            t = t + pltpu.roll(t, shift=shift, axis=1)
            shift *= 2
        return t
    acc = t                            # general W: W-1 rolls
    for w in range(1, W):
        acc = acc + pltpu.roll(t, shift=w * C, axis=1)
    return acc


def _instance_norm_relu(y, B, H, W, C):
    """InstanceNorm2d(affine=False) + ReLU on a (B*H, W*C) lane-dense f32 tile.
    Statistics are per image (reduce over H*W per channel), single pass:
    sum + sum-of-squares, var = E[x^2] - mu^2 (clamped >= 0 against f32
    cancellation on near-constant channels)."""
    WC = W * C
    inv_hw = 1.0 / float(H * W)
    y_img = y.reshape(B, H, WC)                       # leading-dim split: layout-free
    s1 = jnp.sum(y_img, axis=1)                       # (B, WC)
    s2 = jnp.sum(y_img * y_img, axis=1)               # (B, WC)
    stats = _channel_group_sum(jnp.concatenate([s1, s2], axis=0), W, C)  # (2B, WC)
    mean = stats[:B] * inv_hw                         # per-channel, lane-broadcast
    var = jnp.maximum(stats[B:] * inv_hw - mean * mean, 0.0)
    inv_std = lax.rsqrt(var + EPS)
    out = (y_img - mean[:, None, :]) * inv_std[:, None, :]
    return jnp.maximum(out, 0.0).reshape(B * H, WC)


def _basic_block_in_kernel(x_ref, w1_ref, w2_ref, o_ref, *, B, H, W, C):
    # x_ref : (B, H, W*C)   B images per grid step, lane-dense
    # w1_ref: (W*C, W*C)    block-diagonal 1x1-conv weight (bf16)
    # w2_ref: (3*W*C, W*C)  banded 3x3-conv weight, blocks stacked by height tap (bf16)
    # o_ref : (B, H, W*C)
    WC = W * C
    BH = B * H

    x = x_ref[...].reshape(BH, WC).astype(jnp.float32)          # (B*H, WC)

    # ---- conv1: 1x1 conv as ONE (B*H, WC) x (WC, WC) matmul + IN + ReLU ----
    y1 = jnp.dot(x.astype(w1_ref.dtype), w1_ref[...],
                 preferred_element_type=jnp.float32)
    y1 = _instance_norm_relu(y1, B, H, W, C)

    # ---- conv2: 3x3 conv, pad 1, as ONE im2col matmul ----
    # Height taps: XLU sublane rolls of y1; per-image top/bottom rows are
    # masked, which also kills cross-image leakage of the wrapped roll.
    # Width taps + channel contraction live inside the banded weight matrix.
    h_idx = lax.broadcasted_iota(jnp.int32, (B, H, WC), 1).reshape(BH, WC)
    tap_up = jnp.where(h_idx == 0, 0.0,
                       pltpu.roll(y1, shift=1, axis=0))          # row h -> y1[h-1]
    tap_dn = jnp.where(h_idx == H - 1, 0.0,
                       pltpu.roll(y1, shift=BH - 1, axis=0))     # row h -> y1[h+1]
    # Cast taps to bf16 individually before the concat: the (B*H, 3*WC) patch
    # is half the bytes/vregs, and the MXU sees the same bf16 operands.
    cdt = w2_ref.dtype
    patch = jnp.concatenate(
        [tap_up.astype(cdt), y1.astype(cdt), tap_dn.astype(cdt)], axis=1)
    y2 = jnp.dot(patch, w2_ref[...], preferred_element_type=jnp.float32)
    y2 = _instance_norm_relu(y2, B, H, W, C)

    # ---- residual add + final ReLU (f32), single unmasked lane-dense store ----
    o_ref[...] = jnp.maximum(y2 + x, 0.0).reshape(B, H, WC).astype(o_ref.dtype)


def _pack_conv1_weight(w1, W, dtype):
    # (Cin, Cout) 1x1 conv -> block-diagonal (W*Cin, W*Cout).
    return jnp.kron(jnp.eye(W, dtype=jnp.float32),
                    w1.astype(jnp.float32)).astype(dtype)


def _pack_conv2_weight(w2, W, dtype):
    # (3, 3, Cin, Cout) HWIO 3x3 conv -> (3*W*Cin, W*Cout): three (W*Cin, W*Cout)
    # blocks (one per height tap dy), each banded over width with the dx taps.
    # Zero-padding of the width boundary falls out of the band structure.
    c_in, c_out = w2.shape[2], w2.shape[3]
    blocks = []
    for dy in range(3):
        blk = jnp.zeros((W * c_in, W * c_out), jnp.float32)
        for dx in range(3):
            blk = blk + jnp.kron(jnp.eye(W, k=1 - dx, dtype=jnp.float32),
                                 w2[dy, dx].astype(jnp.float32))
        blocks.append(blk)
    return jnp.concatenate(blocks, axis=0).astype(dtype)


def _choose_image_block(N, H, target_rows=256):
    """Largest B that divides N, keeps the grid length >= 2 (v7x has 2
    TensorCores), and stops growing once B*H reaches ~target_rows MXU rows
    (256 on v6e/v7x; anything >= 128 already fills v5e)."""
    best = 1
    for B in range(1, N + 1):
        if N % B:
            continue
        if N >= 2 and N // B < 2:
            break
        best = B
        if B * H >= target_rows:
            break
    return best


def basic_block_in(x_nhwc, w1, b1, w2, b2, *, matmul_dtype=jnp.bfloat16,
                   images_per_step=None):
    """BasicBlock_IN forward (stride=1, first=False identity path).

    x_nhwc: (N,H,W,Cin); w1: (Cin,C) 1x1 conv; w2: (3,3,C,C) HWIO 3x3 conv.
    b1/b2 are accepted for interface fidelity but NOT used: a per-channel bias
    added before InstanceNorm2d(affine=False) is exactly cancelled by the mean
    subtraction, so it has zero effect on the output (saves two DMAs + adds).
    """
    del b1, b2
    N, H, W, Cin = x_nhwc.shape
    C = w1.shape[1]
    assert Cin == C, "residual add requires inplanes == planes (stride=1, first=False)"
    WC = W * C

    # Lane-dense layout: fold W into the lane dim (free, contiguous reshape).
    x_flat = x_nhwc.reshape(N, H, WC)

    w1_big = _pack_conv1_weight(w1, W, matmul_dtype)        # (WC, WC)
    w2_big = _pack_conv2_weight(w2, W, matmul_dtype)        # (3*WC, WC)

    B = images_per_step or _choose_image_block(N, H)
    kernel = functools.partial(_basic_block_in_kernel, B=B, H=H, W=W, C=C)

    grid_spec = pltpu.PrefetchScalarGridSpec(
        num_scalar_prefetch=0,
        grid=(N // B,),
        in_specs=[
            pl.BlockSpec((B, H, WC), lambda n: (n, 0, 0)),
            # Weight index_maps are constant across the grid, so Pallas only
            # DMAs them on the first step.
            # TODO(synk): request pipeline_mode=pl.Buffered(1) for these once
            # W*C grows enough that the idle second revolving weight buffer
            # matters for VMEM (trivial at 128 KiB today).
            pl.BlockSpec((WC, WC), lambda n: (0, 0)),
            pl.BlockSpec((3 * WC, WC), lambda n: (0, 0)),
        ],
        out_specs=pl.BlockSpec((B, H, WC), lambda n: (n, 0, 0)),
    )

    # VMEM budget: double-buffered activation tiles + weight set, with 2x
    # headroom; never below the 32 MiB scoped default and capped at 48 MiB so
    # we keep slack inside v7x's 64 MiB physical VMEM (v5e/v6e have 128 MiB).
    # TODO(synk): for production shapes with C >= 128, drop the W-fold (these
    # packed weights scale as (W*C)^2) and switch to dense
    # (B*H*W, Cin) x (Cin, Cout) matmuls with C as the lane dim.
    act_bytes = 2 * (2 * B * H * WC * 4)                       # in+out, double-buffered
    wgt_bytes = 4 * WC * WC * jnp.dtype(matmul_dtype).itemsize
    vmem_limit = int(min(max(2 * (act_bytes + wgt_bytes), 32 << 20), 48 << 20))

    out_flat = pl.pallas_call(
        kernel,
        out_shape=jax.ShapeDtypeStruct((N, H, WC), x_nhwc.dtype),
        grid_spec=grid_spec,
        compiler_params=pltpu.CompilerParams(
            dimension_semantics=("parallel",),   # grid >= 2 keeps both v7x TCs busy
            vmem_limit_bytes=vmem_limit,
        ),
    )(x_flat, w1_big, w2_big)

    return out_flat.reshape(N, H, W, C)


def basic_block_in_reference(x_nhwc, w1, b1, w2, b2):
    """Pure-JAX f32 reference of the same forward, for correctness checking."""
    dn = ('NHWC', 'HWIO', 'NHWC')

    def inorm(y):
        mu = jnp.mean(y, axis=(1, 2), keepdims=True)
        var = jnp.mean((y - mu) ** 2, axis=(1, 2), keepdims=True)
        return (y - mu) * lax.rsqrt(var + EPS)

    y1 = lax.conv_general_dilated(x_nhwc, w1.reshape(1, 1, *w1.shape), (1, 1),
                                  'VALID', dimension_numbers=dn) + b1
    y1 = jnp.maximum(inorm(y1), 0.0)
    y2 = lax.conv_general_dilated(y1, w2, (1, 1), ((1, 1), (1, 1)),
                                  dimension_numbers=dn) + b2
    y2 = jnp.maximum(inorm(y2), 0.0)
    return jnp.maximum(y2 + x_nhwc, 0.0)


if __name__ == "__main__":
    # inplanes == planes (stride=1, first=False); W * C == 128 -> exactly lane-dense.
    # N=8 so the batched grid blocks 4 images per step across a length-2 grid.
    N, C, H, W = 8, 8, 16, 16

    key = jax.random.PRNGKey(0)
    kx, k1, kb1, k2, kb2 = jax.random.split(key, 5)

    # PyTorch-side input is NCHW; kernel layout is NHWC (lane-dense internally).
    x_nchw = jax.random.normal(kx, (N, C, H, W), dtype=jnp.float32)
    x_nhwc = jnp.transpose(x_nchw, (0, 2, 3, 1))

    w1 = jax.random.normal(k1, (C, C), dtype=jnp.float32) * 0.1        # 1x1 conv (Cin, Cout)
    b1 = jax.random.normal(kb1, (C,), dtype=jnp.float32) * 0.1
    w2 = jax.random.normal(k2, (3, 3, C, C), dtype=jnp.float32) * 0.1  # 3x3 conv HWIO
    b2 = jax.random.normal(kb2, (C,), dtype=jnp.float32) * 0.1

    out_nhwc = jax.block_until_ready(basic_block_in(x_nhwc, w1, b1, w2, b2))
    out_nchw = jnp.transpose(out_nhwc, (0, 3, 1, 2))  # back to PyTorch NCHW

    ref = basic_block_in_reference(x_nhwc, w1, b1, w2, b2)
    assert out_nchw.shape == (N, C, H, W)
    # bf16 MXU operands (f32 accumulate / IN stats / residual) => slightly
    # looser tolerance than a pure-f32 kernel.
    assert jnp.allclose(out_nhwc, ref, rtol=3e-2, atol=3e-2), "mismatch vs JAX reference"

    print("KERNEL_OK")
</pallas_src>

<mosaic_0001>
module attributes {stable_mosaic.version = 11 : i64} {
  func.func @_basic_block_in_kernel(%arg0: i32, %arg1: memref<4x16x128xf32, #tpu.memory_space<vmem>>, %arg2: memref<128x128xbf16, #tpu.memory_space<vmem>>, %arg3: memref<384x128xbf16, #tpu.memory_space<vmem>>, %arg4: memref<4x16x128xf32, #tpu.memory_space<vmem>>) attributes {dimension_semantics = [#tpu.dimension_semantics<parallel>], iteration_bounds = array<i64: 2>, scalar_prefetch = 0 : i64, scratch_operands = 0 : i64, tpu.core_type = #tpu.core_type<tc>, window_params = [{transform_indices = @transform_0, window_bounds = array<i64: 4, 16, 128>}, {pipeline_mode = #tpu.pipeline_mode<synchronous>, transform_indices = @transform_1, window_bounds = array<i64: 128, 128>}, {pipeline_mode = #tpu.pipeline_mode<synchronous>, transform_indices = @transform_2, window_bounds = array<i64: 384, 128>}, {transform_indices = @transform_3, window_bounds = array<i64: 4, 16, 128>}]} {
    %c0 = arith.constant 0 : index
    %c0_0 = arith.constant 0 : index
    %c0_1 = arith.constant 0 : index
    %0 = vector.load %arg1[%c0, %c0_0, %c0_1] : memref<4x16x128xf32, #tpu.memory_space<vmem>>, vector<4x16x128xf32>
    %1 = vector.shape_cast %0 : vector<4x16x128xf32> to vector<64x128xf32>
    %2 = arith.truncf %1 : vector<64x128xf32> to vector<64x128xbf16>
    %c0_2 = arith.constant 0 : index
    %c0_3 = arith.constant 0 : index
    %3 = vector.load %arg2[%c0_2, %c0_3] : memref<128x128xbf16, #tpu.memory_space<vmem>>, vector<128x128xbf16>
    %cst = arith.constant dense<0.000000e+00> : vector<64x128xf32>
    %4 = tpu.matmul %2, %3, %cst {dimension_numbers = #tpu.dot_dimension_numbers<[1], [0], [0], [1], [0, 0, 1, 1], [], []>} : vector<64x128xbf16>, vector<128x128xbf16>, vector<64x128xf32> -> vector<64x128xf32>
    %5 = vector.shape_cast %4 : vector<64x128xf32> to vector<4x16x128xf32>
    %cst_4 = arith.constant dense<0.000000e+00> : vector<4x128xf32>
    %6 = vector.multi_reduction <add>, %5, %cst_4 [1] : vector<4x16x128xf32> to vector<4x128xf32>
    %7 = arith.mulf %5, %5 : vector<4x16x128xf32>
    %cst_5 = arith.constant dense<0.000000e+00> : vector<4x128xf32>
    %8 = vector.multi_reduction <add>, %7, %cst_5 [1] : vector<4x16x128xf32> to vector<4x128xf32>
    %9 = tpu.concatenate %6, %8 in 0 : vector<4x128xf32>, vector<4x128xf32> -> vector<8x128xf32>
    %c8_i32 = arith.constant 8 : i32
    %10 = tpu.dynamic_rotate %9 by %c8_i32 dim 1 : vector<8x128xf32>, i32 -> vector<8x128xf32>
    %11 = arith.addf %9, %10 : vector<8x128xf32>
    %c16_i32 = arith.constant 16 : i32
    %12 = tpu.dynamic_rotate %11 by %c16_i32 dim 1 : vector<8x128xf32>, i32 -> vector<8x128xf32>
    %13 = arith.addf %11, %12 : vector<8x128xf32>
    %c32_i32 = arith.constant 32 : i32
    %14 = tpu.dynamic_rotate %13 by %c32_i32 dim 1 : vector<8x128xf32>, i32 -> vector<8x128xf32>
    %15 = arith.addf %13, %14 : vector<8x128xf32>
    %c64_i32 = arith.constant 64 : i32
    %16 = tpu.dynamic_rotate %15 by %c64_i32 dim 1 : vector<8x128xf32>, i32 -> vector<8x128xf32>
    %17 = arith.addf %15, %16 : vector<8x128xf32>
    %18 = vector.extract_strided_slice %17 {offsets = [0, 0], sizes = [4, 128], strides = [1, 1]} : vector<8x128xf32> to vector<4x128xf32>
    %cst_6 = arith.constant 3.906250e-03 : f32
    %19 = vector.broadcast %cst_6 : f32 to vector<4x128xf32>
    %20 = arith.mulf %18, %19 : vector<4x128xf32>
    %21 = vector.extract_strided_slice %17 {offsets = [4, 0], sizes = [4, 128], strides = [1, 1]} : vector<8x128xf32> to vector<4x128xf32>
    %cst_7 = arith.constant 3.906250e-03 : f32
    %22 = vector.broadcast %cst_7 : f32 to vector<4x128xf32>
    %23 = arith.mulf %21, %22 : vector<4x128xf32>
    %24 = arith.mulf %20, %20 : vector<4x128xf32>
    %25 = arith.subf %23, %24 : vector<4x128xf32>
    %cst_8 = arith.constant 0.000000e+00 : f32
    %26 = vector.broadcast %cst_8 : f32 to vector<4x128xf32>
    %27 = arith.maximumf %25, %26 : vector<4x128xf32>
    %cst_9 = arith.constant 9.99999974E-6 : f32
    %28 = vector.broadcast %cst_9 : f32 to vector<4x128xf32>
    %29 = arith.addf %27, %28 : vector<4x128xf32>
    %30 = math.rsqrt %29 : vector<4x128xf32>
    %31 = vector.shape_cast %20 : vector<4x128xf32> to vector<4x1x128xf32>
    %32 = vector.broadcast %31 : vector<4x1x128xf32> to vector<4x16x128xf32>
    %33 = arith.subf %5, %32 : vector<4x16x128xf32>
    %34 = vector.shape_cast %30 : vector<4x128xf32> to vector<4x1x128xf32>
    %35 = vector.broadcast %34 : vector<4x1x128xf32> to vector<4x16x128xf32>
    %36 = arith.mulf %33, %35 : vector<4x16x128xf32>
    %cst_10 = arith.constant 0.000000e+00 : f32
    %37 = vector.broadcast %cst_10 : f32 to vector<4x16x128xf32>
    %38 = arith.maximumf %36, %37 : vector<4x16x128xf32>
    %39 = vector.shape_cast %38 : vector<4x16x128xf32> to vector<64x128xf32>
    %40 = tpu.iota {dimensions = array<i32: 1>} : vector<4x16x128xi32>
    %41 = vector.shape_cast %40 : vector<4x16x128xi32> to vector<64x128xi32>
    %c0_i32 = arith.constant 0 : i32
    %42 = vector.broadcast %c0_i32 : i32 to vector<64x128xi32>
    %43 = arith.cmpi eq, %41, %42 : vector<64x128xi32>
    %c1_i32 = arith.constant 1 : i32
    %44 = tpu.dynamic_rotate %39 by %c1_i32 dim 0 : vector<64x128xf32>, i32 -> vector<64x128xf32>
    %cst_11 = arith.constant 0.000000e+00 : f32
    %45 = vector.broadcast %cst_11 : f32 to vector<64x128xf32>
    %46 = arith.select %43, %45, %44 : vector<64x128xi1>, vector<64x128xf32>
    %c15_i32 = arith.constant 15 : i32
    %47 = vector.broadcast %c15_i32 : i32 to vector<64x128xi32>
    %48 = arith.cmpi eq, %41, %47 : vector<64x128xi32>
    %c63_i32 = arith.constant 63 : i32
    %49 = tpu.dynamic_rotate %39 by %c63_i32 dim 0 : vector<64x128xf32>, i32 -> vector<64x128xf32>
    %cst_12 = arith.constant 0.000000e+00 : f32
    %50 = vector.broadcast %cst_12 : f32 to vector<64x128xf32>
    %51 = arith.select %48, %50, %49 : vector<64x128xi1>, vector<64x128xf32>
    %52 = arith.truncf %46 : vector<64x128xf32> to vector<64x128xbf16>
    %53 = arith.truncf %39 : vector<64x128xf32> to vector<64x128xbf16>
    %54 = arith.truncf %51 : vector<64x128xf32> to vector<64x128xbf16>
    %55 = tpu.concatenate %52, %53, %54 in 1 : vector<64x128xbf16>, vector<64x128xbf16>, vector<64x128xbf16> -> vector<64x384xbf16>
    %c0_13 = arith.constant 0 : index
    %c0_14 = arith.constant 0 : index
    %56 = vector.load %arg3[%c0_13, %c0_14] : memref<384x128xbf16, #tpu.memory_space<vmem>>, vector<384x128xbf16>
    %cst_15 = arith.constant dense<0.000000e+00> : vector<64x128xf32>
    %57 = tpu.matmul %55, %56, %cst_15 {dimension_numbers = #tpu.dot_dimension_numbers<[1], [0], [0], [1], [0, 0, 1, 1], [], []>} : vector<64x384xbf16>, vector<384x128xbf16>, vector<64x128xf32> -> vector<64x128xf32>
    %58 = vector.shape_cast %57 : vector<64x128xf32> to vector<4x16x128xf32>
    %cst_16 = arith.constant dense<0.000000e+00> : vector<4x128xf32>
    %59 = vector.multi_reduction <add>, %58, %cst_16 [1] : vector<4x16x128xf32> to vector<4x128xf32>
    %60 = arith.mulf %58, %58 : vector<4x16x128xf32>
    %cst_17 = arith.constant dense<0.000000e+00> : vector<4x128xf32>
    %61 = vector.multi_reduction <add>, %60, %cst_17 [1] : vector<4x16x128xf32> to vector<4x128xf32>
    %62 = tpu.concatenate %59, %61 in 0 : vector<4x128xf32>, vector<4x128xf32> -> vector<8x128xf32>
    %c8_i32_18 = arith.constant 8 : i32
    %63 = tpu.dynamic_rotate %62 by %c8_i32_18 dim 1 : vector<8x128xf32>, i32 -> vector<8x128xf32>
    %64 = arith.addf %62, %63 : vector<8x128xf32>
    %c16_i32_19 = arith.constant 16 : i32
    %65 = tpu.dynamic_rotate %64 by %c16_i32_19 dim 1 : vector<8x128xf32>, i32 -> vector<8x128xf32>
    %66 = arith.addf %64, %65 : vector<8x128xf32>
    %c32_i32_20 = arith.constant 32 : i32
    %67 = tpu.dynamic_rotate %66 by %c32_i32_20 dim 1 : vector<8x128xf32>, i32 -> vector<8x128xf32>
    %68 = arith.addf %66, %67 : vector<8x128xf32>
    %c64_i32_21 = arith.constant 64 : i32
    %69 = tpu.dynamic_rotate %68 by %c64_i32_21 dim 1 : vector<8x128xf32>, i32 -> vector<8x128xf32>
    %70 = arith.addf %68, %69 : vector<8x128xf32>
    %71 = vector.extract_strided_slice %70 {offsets = [0, 0], sizes = [4, 128], strides = [1, 1]} : vector<8x128xf32> to vector<4x128xf32>
    %cst_22 = arith.constant 3.906250e-03 : f32
    %72 = vector.broadcast %cst_22 : f32 to vector<4x128xf32>
    %73 = arith.mulf %71, %72 : vector<4x128xf32>
    %74 = vector.extract_strided_slice %70 {offsets = [4, 0], sizes = [4, 128], strides = [1, 1]} : vector<8x128xf32> to vector<4x128xf32>
    %cst_23 = arith.constant 3.906250e-03 : f32
    %75 = vector.broadcast %cst_23 : f32 to vector<4x128xf32>
    %76 = arith.mulf %74, %75 : vector<4x128xf32>
    %77 = arith.mulf %73, %73 : vector<4x128xf32>
    %78 = arith.subf %76, %77 : vector<4x128xf32>
    %cst_24 = arith.constant 0.000000e+00 : f32
    %79 = vector.broadcast %cst_24 : f32 to vector<4x128xf32>
    %80 = arith.maximumf %78, %79 : vector<4x128xf32>
    %cst_25 = arith.constant 9.99999974E-6 : f32
    %81 = vector.broadcast %cst_25 : f32 to vector<4x128xf32>
    %82 = arith.addf %80, %81 : vector<4x128xf32>
    %83 = math.rsqrt %82 : vector<4x128xf32>
    %84 = vector.shape_cast %73 : vector<4x128xf32> to vector<4x1x128xf32>
    %85 = vector.broadcast %84 : vector<4x1x128xf32> to vector<4x16x128xf32>
    %86 = arith.subf %58, %85 : vector<4x16x128xf32>
    %87 = vector.shape_cast %83 : vector<4x128xf32> to vector<4x1x128xf32>
    %88 = vector.broadcast %87 : vector<4x1x128xf32> to vector<4x16x128xf32>
    %89 = arith.mulf %86, %88 : vector<4x16x128xf32>
    %cst_26 = arith.constant 0.000000e+00 : f32
    %90 = vector.broadcast %cst_26 : f32 to vector<4x16x128xf32>
    %91 = arith.maximumf %89, %90 : vector<4x16x128xf32>
    %92 = vector.shape_cast %91 : vector<4x16x128xf32> to vector<64x128xf32>
    %93 = arith.addf %92, %1 : vector<64x128xf32>
    %cst_27 = arith.constant 0.000000e+00 : f32
    %94 = vector.broadcast %cst_27 : f32 to vector<64x128xf32>
    %95 = arith.maximumf %93, %94 : vector<64x128xf32>
    %96 = vector.shape_cast %95 : vector<64x128xf32> to vector<4x16x128xf32>
    %c0_28 = arith.constant 0 : index
    %c0_29 = arith.constant 0 : index
    %c0_30 = arith.constant 0 : index
    %97 = vector.load %arg4[%c0_28, %c0_29, %c0_30] : memref<4x16x128xf32, #tpu.memory_space<vmem>>, vector<4x16x128xf32>
    tpu.vector_store %arg4[%c0_28, %c0_29, %c0_30], %96 {strides = array<i32>} : memref<4x16x128xf32, #tpu.memory_space<vmem>>, vector<4x16x128xf32>,
    return
  }
  func.func @transform_0(%arg0: i32) -> (i32, i32, i32) {
    %c0_i32 = arith.constant 0 : i32
    %c0_i32_0 = arith.constant 0 : i32
    %c0_i32_1 = arith.constant 0 : i32
    return %arg0, %c0_i32, %c0_i32_0 : i32, i32, i32
  }
  func.func @transform_1(%arg0: i32) -> (i32, i32) {
    %c0_i32 = arith.constant 0 : i32
    %c0_i32_0 = arith.constant 0 : i32
    %c0_i32_1 = arith.constant 0 : i32
    return %c0_i32, %c0_i32_0 : i32, i32
  }
  func.func @transform_2(%arg0: i32) -> (i32, i32) {
    %c0_i32 = arith.constant 0 : i32
    %c0_i32_0 = arith.constant 0 : i32
    %c0_i32_1 = arith.constant 0 : i32
    return %c0_i32, %c0_i32_0 : i32, i32
  }
  func.func @transform_3(%arg0: i32) -> (i32, i32, i32) {
    %c0_i32 = arith.constant 0 : i32
    %c0_i32_0 = arith.constant 0 : i32
    %c0_i32_1 = arith.constant 0 : i32
    return %arg0, %c0_i32, %c0_i32_0 : i32, i32, i32
  }
}

</mosaic_0001>

<llo_original>
// kernel: tpu_custom_call.1
$region0: #{tpu_custom_call.1}
  #allocation0 [shape = 'u32[]', space=smem, size = 0x4, offset = 0x4, fixed_abs, tag = 'smem constant byte address 0x4 - core index']
  #allocation1 [shape = 'u32[144,128]{1,0:T(1,128)}', space=vmem, size = 0x12000, scoped, tag = 'internal scratch']
  %s0 = inlined_call_operand.hbm [shape: f32[8,16,128], index: 0, kind: input, shape index: {}]
  %s1 = inlined_call_operand.hbm [shape: bf16[128,128], index: 1, kind: input, shape index: {}]
  %s2 = inlined_call_operand.hbm [shape: bf16[384,128], index: 2, kind: input, shape index: {}]
  %s3 = inlined_call_operand.hbm [shape: f32[8,16,128], index: 3, kind: output, shape index: {}]
  %s4 = sld [smem:[#allocation0]]
  $region57: #{tpu_custom_call.1} parent=0
    _
  %s6 = ssub.s32 1, %s4
  %s7 = scalar_select 0, %s6, %s4
  $region1: #{tpu_custom_call.1} parent=0
    #allocation2 [shape = 'u8[65536]{0}', space=vmem, size = 0x10000, scoped, tag = 'input window, operand 0']
    #allocation3 [shape = 's32[2]{0}', space=sflag, size = 0x8, scoped, tag = 'scoped memory for tpu_custom_call.1']
    #allocation4 [shape = 's32[2]{0}', space=sflag, size = 0x8, scoped, tag = 'scoped memory for tpu_custom_call.1']
    #allocation5 [shape = 'u8[32768]{0}', space=vmem, size = 0x8000, scoped, tag = 'input window, operand 1, single buffered']
    #allocation6 [shape = 's32[1]{0}', space=sflag, size = 0x4, scoped, tag = 'scoped memory for tpu_custom_call.1']
    #allocation7 [shape = 'u8[98304]{0}', space=vmem, size = 0x18000, scoped, tag = 'input window, operand 2, single buffered']
    #allocation8 [shape = 'u8[65536]{0}', space=vmem, size = 0x10000, scoped, tag = 'output window, operand 0']
    %8 = vsyncpa [#allocation3], 0
    %s9 = scalar_lea.sflag [#allocation3], 1
    %10 = vsyncpa %s9, 0
    %11 = vsyncpa [#allocation6], 0
    %12 = vsyncpa [#allocation4], 0
    %s13 = scalar_lea.sflag [#allocation4], 1
    %14 = vsyncpa %s13, 0
    loop: start=0, step=1, limit=4
    $region2: #{tpu_custom_call.1} parent=1 // loop_pre_header
      _
    $region3: #{tpu_custom_call.1} parent=1 // loop_header
      %s16 = sphi 0, %s20
      %p17 = scmp.ge.s32.totalorder %s16, 4
      %s26 = sphi 0, %s28
      %s29 = sphi 0, %s26
      %s30 = sphi 0, %s29
      %s46 = sphi 0, %s30
      %s50 = sphi 0, %s50
      %s52 = sphi 0, %s50
      %s53 = sphi 0, %s52
      %s67 = sphi 0, %s53
      %s71 = sphi 0, %s71
      %s73 = sphi 0, %s71
      %s74 = sphi 0, %s73
      %s88 = sphi 0, %s74
      %s94 = sphi 0, %s96
      %s97 = sphi 0, %s94
      %s98 = sphi 0, %s97
      %s114 = sphi 0, %s98
    $region4: #{tpu_custom_call.1} parent=1 // loop_header_branch
      %19 = sbr.rel (%p17) target = $region8
    $region5: #{tpu_custom_call.1} parent=1 // loop_body
      %s21 = ssub.s32 %s16, 1
      %s22 = ssub.s32 %s16, 2
      %s23 = sadd.s32 %s16, 1
      %s24 = ssub.s32 %s16, %s23
      %p25 = scmp.eq.s32.totalorder %s24, 0
      %s27 = sadd.s32 %s26, 1
      %s28 = scalar_select %p25, %s26, %s27
      %p31 = pneg %p25
      %p32 = scmp.eq.s32.totalorder %s16, 1
      %p33 = por %p31, %p32
      %p34 = scmp.ne.s32.totalorder %s26, %s29
      %p35 = scmp.eq.s32.totalorder %s16, 0
      %p36 = por %p34, %p35
      %p37 = scmp.ne.s32.totalorder %s26, %s29
      %p38 = scmp.eq.s32.totalorder %s21, 1
      %p39 = por %p37, %p38
      %p40 = scmp.ne.s32.totalorder %s29, %s30
      %p41 = scmp.eq.s32.totalorder %s21, 0
      %p42 = por %p40, %p41
      %p43 = scmp.ne.s32.totalorder %s29, %s30
      %p44 = scmp.eq.s32.totalorder %s22, 1
      %p45 = por %p43, %p44
      %p47 = scmp.ne.s32.totalorder %s30, %s46
      %p48 = scmp.eq.s32.totalorder %s22, 0
      %p49 = por %p47, %p48
      %s51 = sadd.s32 %s50, 1
      %p54 = scmp.eq.s32.totalorder %s16, 1
      %p55 = scmp.ne.s32.totalorder %s50, %s52
      %p56 = scmp.eq.s32.totalorder %s16, 0
      %p57 = por %p55, %p56
      %p58 = scmp.ne.s32.totalorder %s50, %s52
      %p59 = scmp.eq.s32.totalorder %s21, 1
      %p60 = por %p58, %p59
      %p61 = scmp.ne.s32.totalorder %s52, %s53
      %p62 = scmp.eq.s32.totalorder %s21, 0
      %p63 = por %p61, %p62
      %p64 = scmp.ne.s32.totalorder %s52, %s53
      %p65 = scmp.eq.s32.totalorder %s22, 1
      %p66 = por %p64, %p65
      %p68 = scmp.ne.s32.totalorder %s53, %s67
      %p69 = scmp.eq.s32.totalorder %s22, 0
      %p70 = por %p68, %p69
      %s72 = sadd.s32 %s71, 1
      %p75 = scmp.eq.s32.totalorder %s16, 1
      %p76 = scmp.ne.s32.totalorder %s71, %s73
      %p77 = scmp.eq.s32.totalorder %s16, 0
      %p78 = por %p76, %p77
      %p79 = scmp.ne.s32.totalorder %s71, %s73
      %p80 = scmp.eq.s32.totalorder %s21, 1
      %p81 = por %p79, %p80
      %p82 = scmp.ne.s32.totalorder %s73, %s74
      %p83 = scmp.eq.s32.totalorder %s21, 0
      %p84 = por %p82, %p83
      %p85 = scmp.ne.s32.totalorder %s73, %s74
      %p86 = scmp.eq.s32.totalorder %s22, 1
      %p87 = por %p85, %p86
      %p89 = scmp.ne.s32.totalorder %s74, %s88
      %p90 = scmp.eq.s32.totalorder %s22, 0
      %p91 = por %p89, %p90
      %s92 = ssub.s32 %s16, %s23
      %p93 = scmp.eq.s32.totalorder %s92, 0
      %s95 = sadd.s32 %s94, 1
      %s96 = scalar_select %p93, %s94, %s95
      %p99 = pneg %p93
      %p100 = scmp.eq.s32.totalorder %s16, 1
      %p101 = por %p99, %p100
      %p102 = scmp.ne.s32.totalorder %s94, %s97
      %p103 = scmp.eq.s32.totalorder %s16, 0
      %p104 = por %p102, %p103
      %p105 = scmp.ne.s32.totalorder %s94, %s97
      %p106 = scmp.eq.s32.totalorder %s21, 1
      %p107 = por %p105, %p106
      %p108 = scmp.ne.s32.totalorder %s97, %s98
      %p109 = scmp.eq.s32.totalorder %s21, 0
      %p110 = por %p108, %p109
      %p111 = scmp.ne.s32.totalorder %s97, %s98
      %p112 = scmp.eq.s32.totalorder %s22, 1
      %p113 = por %p111, %p112
      %p115 = scmp.ne.s32.totalorder %s98, %s114
      %p116 = scmp.eq.s32.totalorder %s22, 0
      %p117 = por %p115, %p116
      %p118 = scmp.le.s32.totalorder 1, %s16
      %p119 = scmp.lt.s32.totalorder %s16, 3
      %p120 = pnand %p118, %p119
      %p121 = pneg %p120
      // Predicated region
      $region9: #{tpu_custom_call.1} parent=5 // pred_check
        _
      $region10: #{tpu_custom_call.1} parent=5 // pred_check_branch
        %123 = sbr.rel (%p120) target = $region12
      $region11: #{tpu_custom_call.1} parent=5 // pred_region
        %s124 = ssub.s32 %s16, 1
        // Predicated region
        $region13: #{tpu_custom_call.1} parent=11 // pred_check
          %p125 = pneg %p63
        $region14: #{tpu_custom_call.1} parent=11 // pred_check_branch
          %127 = sbr.rel (%p125) target = $region16
        $region15: #{tpu_custom_call.1} parent=11 // pred_region
          %s129 = ssub.s32 1024, 1024
          %130 = vsyncadd [#allocation6], %s129
          %s131 = sshll.u32 [#allocation5], 4
          %s132 = int_to_ptr.vmem [resolvable:$true] %s131
          %137 = dma.hbm_to_vmem [thread:$0]  %s1, 1024, %s132, [#allocation6], 64, 64, 4
        $region16: #{tpu_custom_call.1} parent=11 // pred_fallthru
          _
        // Predicated region
        $region17: #{tpu_custom_call.1} parent=11 // pred_check
          %p138 = pneg %p84
        $region18: #{tpu_custom_call.1} parent=11 // pred_check_branch
          %140 = sbr.rel (%p138) target = $region20
        $region19: #{tpu_custom_call.1} parent=11 // pred_region
          %s142 = ssub.s32 3072, 3072
          %143 = vsyncadd [#allocation6], %s142
          %s144 = sshll.u32 [#allocation7], 4
          %s145 = int_to_ptr.vmem [resolvable:$true] %s144
          %150 = dma.hbm_to_vmem [thread:$0]  %s2, 3072, %s145, [#allocation6], 64, 64, 4
        $region20: #{tpu_custom_call.1} parent=11 // pred_fallthru
          _
      $region12: #{tpu_custom_call.1} parent=5 // pred_fallthru
        _
      %p151 = scmp.lt.s32.totalorder %s16, 2
      // Predicated region
      $region21: #{tpu_custom_call.1} parent=5 // pred_check
        %p152 = pneg %p151
      $region22: #{tpu_custom_call.1} parent=5 // pred_check_branch
        %154 = sbr.rel (%p152) target = $region24
      $region23: #{tpu_custom_call.1} parent=5 // pred_region
        // Predicated region
        $region25: #{tpu_custom_call.1} parent=23 // pred_check
          %p155 = pneg %p36
        $region26: #{tpu_custom_call.1} parent=23 // pred_check_branch
          %157 = sbr.rel (%p155) target = $region28
        $region27: #{tpu_custom_call.1} parent=23 // pred_region
          %s158 = sand.u32 %s26, 1
          %s159 = scalar_lea.sflag [#allocation3], %s158
          %s160 = sand.u32 %s26, 1
          %s161 = smul.addr %s160, 64
          %s162 = scalar_lea.vmem [#allocation2], %s161
          %s163 = smul.u32 4, %s16
          %s165 = ssub.s32 1024, 1024
          %166 = vsyncadd %s159, %s165
          %s167 = smul.addr %s163, 2
          %s168 = smul.addr %s167, 128
          %s169 = scalar_lea.hbm %s0, %s168
          %s170 = sshll.u32 %s162, 4
          %s171 = int_to_ptr.vmem [resolvable:$true] %s170
          %176 = dma.hbm_to_vmem [thread:$0]  %s169, 1024, %s171, %s159, 128, 128, 8
        $region28: #{tpu_custom_call.1} parent=23 // pred_fallthru
          _
      $region24: #{tpu_custom_call.1} parent=5 // pred_fallthru
        _
      %p177 = scmp.le.s32.totalorder 1, %s16
      %p178 = scmp.lt.s32.totalorder %s16, 3
      %p179 = pnand %p177, %p178
      %p180 = pneg %p179
      // Predicated region
      $region29: #{tpu_custom_call.1} parent=5 // pred_check
        _
      $region30: #{tpu_custom_call.1} parent=5 // pred_check_branch
        %182 = sbr.rel (%p179) target = $region32
      $region31: #{tpu_custom_call.1} parent=5 // pred_region
        %s183 = ssub.s32 %s16, 1
        %s184 = sand.u32 %s29, 1
        %s185 = scalar_lea.sflag [#allocation3], %s184
        %s186 = sand.u32 %s29, 1
        %s187 = smul.addr %s186, 64
        %s188 = scalar_lea.vmem [#allocation2], %s187
        // Predicated region
        $region33: #{tpu_custom_call.1} parent=31 // pred_check
          %p189 = pneg %p42
        $region34: #{tpu_custom_call.1} parent=31 // pred_check_branch
          %191 = sbr.rel (%p189) target = $region36
        $region35: #{tpu_custom_call.1} parent=31 // pred_region
          %192 = dma.done %s185, 1024
        $region36: #{tpu_custom_call.1} parent=31 // pred_fallthru
          _
        // Predicated region
        $region37: #{tpu_custom_call.1} parent=31 // pred_check
          %p193 = pneg %p63
        $region38: #{tpu_custom_call.1} parent=31 // pred_check_branch
          %195 = sbr.rel (%p193) target = $region40
        $region39: #{tpu_custom_call.1} parent=31 // pred_region
          %196 = dma.done [#allocation6], 1024
        $region40: #{tpu_custom_call.1} parent=31 // pred_fallthru
          _
        // Predicated region
        $region41: #{tpu_custom_call.1} parent=31 // pred_check
          %p197 = pneg %p84
        $region42: #{tpu_custom_call.1} parent=31 // pred_check_branch
          %199 = sbr.rel (%p197) target = $region44
        $region43: #{tpu_custom_call.1} parent=31 // pred_region
          %200 = dma.done [#allocation6], 3072
        $region44: #{tpu_custom_call.1} parent=31 // pred_fallthru
          _
        %s201 = sand.u32 %s29, 1
        %s202 = scalar_lea.sflag [#allocation3], %s201
        %s203 = sand.u32 %s29, 1
        %s204 = smul.addr %s203, 64
        %s205 = scalar_lea.vmem [#allocation2], %s204
        %p206 = pneg %p42
        %p207 = pneg %p39
        %p208 = pneg %p63
        %p209 = pneg %p60
        %p210 = pneg %p84
        %p211 = pneg %p81
        %p212 = pneg %p110
        %p213 = pneg %p107
        %s214 = sand.u32 %s97, 1
        %s215 = scalar_lea.sflag [#allocation4], %s214
        %s216 = sand.u32 %s97, 1
        %s217 = smul.addr %s216, 64
        %s218 = scalar_lea.vmem [#allocation8], %s217
        %s219 = smul.u32 4, %s21
        %s220 = smul.u32 4, %s21
        %v222 = vld [vmem:[%s188] sm:$0xff]
        %v223 = vld [vmem:[%s188 + $0x8] sm:$0xff]
        %v224 = vld [vmem:[%s188 + $0x10] sm:$0xff]
        %v225 = vld [vmem:[%s188 + $0x18] sm:$0xff]
        %v226 = vld [vmem:[%s188 + $0x20] sm:$0xff]
        %v227 = vld [vmem:[%s188 + $0x28] sm:$0xff]
        %v228 = vld [vmem:[%s188 + $0x30] sm:$0xff]
        %v229 = vld [vmem:[%s188 + $0x38] sm:$0xff]
        %v230 = vpack.c.bf16 %v223, %v222
        %v231 = vpack.c.bf16 %v225, %v224
        %v232 = vpack.c.bf16 %v227, %v226
        %v233 = vpack.c.bf16 %v229, %v228
        %v234 = vld [vmem:[#allocation5] sm:$0xf]
        %v235 = vld [vmem:[#allocation5 + $0x4] sm:$0xf]
        %v236 = vld [vmem:[#allocation5 + $0x8] sm:$0xf]
        %v237 = vld [vmem:[#allocation5 + $0xc] sm:$0xf]
        %v238 = vld [vmem:[#allocation5 + $0x10] sm:$0xf]
        %v239 = vld [vmem:[#allocation5 + $0x14] sm:$0xf]
        %v240 = vld [vmem:[#allocation5 + $0x18] sm:$0xf]
        %v241 = vld [vmem:[#allocation5 + $0x1c] sm:$0xf]
        %v242 = vld [vmem:[#allocation5 + $0x20] sm:$0xf]
        %v243 = vld [vmem:[#allocation5 + $0x24] sm:$0xf]
        %v244 = vld [vmem:[#allocation5 + $0x28] sm:$0xf]
        %v245 = vld [vmem:[#allocation5 + $0x2c] sm:$0xf]
        %v246 = vld [vmem:[#allocation5 + $0x30] sm:$0xf]
        %v247 = vld [vmem:[#allocation5 + $0x34] sm:$0xf]
        %v248 = vld [vmem:[#allocation5 + $0x38] sm:$0xf]
        %v249 = vld [vmem:[#allocation5 + $0x3c] sm:$0xf]
        %v266 = vunpack.c.l.b16 %v234
        %v267 = vunpack.c.l.b16 %v235
        %v268 = vunpack.c.l.b16 %v236
        %v269 = vunpack.c.l.b16 %v237
        %v270 = vunpack.c.l.b16 %v238
        %v271 = vunpack.c.l.b16 %v239
        %v272 = vunpack.c.l.b16 %v240
        %v273 = vunpack.c.l.b16 %v241
        %v274 = vunpack.c.l.b16 %v242
        %v275 = vunpack.c.l.b16 %v243
        %v276 = vunpack.c.l.b16 %v244
        %v277 = vunpack.c.l.b16 %v245
        %v278 = vunpack.c.l.b16 %v246
        %v279 = vunpack.c.l.b16 %v247
        %v280 = vunpack.c.l.b16 %v248
        %v281 = vunpack.c.l.b16 %v249
        %v282 = vpack.c.b16 %v267, %v266
        %v283 = vpack.c.b16 %v269, %v268
        %v284 = vpack.c.b16 %v271, %v270
        %v285 = vpack.c.b16 %v273, %v272
        %v286 = vpack.c.b16 %v275, %v274
        %v287 = vpack.c.b16 %v277, %v276
        %v288 = vpack.c.b16 %v279, %v278
        %v289 = vpack.c.b16 %v281, %v280
        %298 = vmatprep.subr.bf16.mxu0 0
        %299 = vmatpush1.bf16.msra.mxu0 %v289
        %300 = vmatprep.subr.bf16.mxu0 0
        %301 = vmatpush1.bf16.msra.mxu0 %v288
        %302 = vmatprep.subr.bf16.mxu0 0
        %303 = vmatpush1.bf16.msra.mxu0 %v287
        %304 = vmatprep.subr.bf16.mxu0 0
        %305 = vmatpush1.bf16.msra.mxu0 %v286
        %306 = vmatprep.subr.bf16.mxu0 0
        %307 = vmatpush1.bf16.msra.mxu0 %v285
        %308 = vmatprep.subr.bf16.mxu0 0
        %309 = vmatpush1.bf16.msra.mxu0 %v284
        %310 = vmatprep.subr.bf16.mxu0 0
        %311 = vmatpush1.bf16.msra.mxu0 %v283
        %312 = vmatprep.subr.bf16.mxu0 0
        %313 = vmatpush1.bf16.msra.mxu0 %v282
        %314 = vmatprep.subr.bf16.mxu0 0
        %315 = vmatpush2.bf16.msra.mxu0 0
        %316 = vmatprep.subr.bf16.mxu0 0
        %317 = vmatpush2.bf16.msra.mxu0 0
        %318 = vmatprep.subr.bf16.mxu0 0
        %319 = vmatpush2.bf16.msra.mxu0 0
        %320 = vmatprep.subr.bf16.mxu0 0
        %321 = vmatpush2.bf16.msra.mxu0 0
        %322 = vmatprep.subr.bf16.mxu0 0
        %323 = vmatpush2.bf16.msra.mxu0 0
        %324 = vmatprep.subr.bf16.mxu0 0
        %325 = vmatpush2.bf16.msra.mxu0 0
        %326 = vmatprep.subr.bf16.mxu0 0
        %327 = vmatpush2.bf16.msra.mxu0 0
        %328 = vmatprep.subr.bf16.mxu0 0
        %329 = vmatpush2.bf16.msra.mxu0 0
        %330 = vmatprep.mubr.bf16.mxu0 0
        %331 = vmatmul.mubr.bf16.gmra.mxu0 %v230
        %v332 = vpop.f32.mrf.mxu0
        %v333 = vadd.f32 0.0, %v332
        %v334 = vpop.f32.mrf.mxu0
        %v335 = vpop.f32.mrf.mxu0
        %v336 = vadd.f32 0.0, %v335
        %v337 = vpop.f32.mrf.mxu0
        %338 = vmatprep.mubr.bf16.mxu0 0
        %339 = vmatmul.mubr.bf16.gmra.mxu0 %v231
        %v340 = vpop.f32.mrf.mxu0
        %v341 = vadd.f32 0.0, %v340
        %v342 = vpop.f32.mrf.mxu0
        %v343 = vpop.f32.mrf.mxu0
        %v344 = vadd.f32 0.0, %v343
        %v345 = vpop.f32.mrf.mxu0
        %346 = vmatprep.mubr.bf16.mxu0 0
        %347 = vmatmul.mubr.bf16.gmra.mxu0 %v232
        %v348 = vpop.f32.mrf.mxu0
        %v349 = vadd.f32 0.0, %v348
        %v350 = vpop.f32.mrf.mxu0
        %v351 = vpop.f32.mrf.mxu0
        %v352 = vadd.f32 0.0, %v351
        %v353 = vpop.f32.mrf.mxu0
        %354 = vmatprep.mubr.bf16.mxu0 0
        %355 = vmatmul.mubr.bf16.gmra.mxu0 %v233
        %v356 = vpop.f32.mrf.mxu0
        %v357 = vadd.f32 0.0, %v356
        %v358 = vpop.f32.mrf.mxu0
        %v359 = vpop.f32.mrf.mxu0
        %v360 = vadd.f32 0.0, %v359
        %v361 = vpop.f32.mrf.mxu0
        %362 = vdwg.mxu0
        %v363 = vadd.f32 %v333, %v336
        %v364 = vrot.slane %v363, 4
        %v365 = vadd.f32 %v363, %v364
        %v366 = vrot.slane %v365, 2
        %v367 = vadd.f32 %v365, %v366
        %v368 = vrot.slane %v367, 1
        %v369 = vadd.f32 %v367, %v368
        %v370 = vadd.f32 %v341, %v344
        %v371 = vrot.slane %v370, 4
        %v372 = vadd.f32 %v370, %v371
        %v373 = vrot.slane %v372, 2
        %v374 = vadd.f32 %v372, %v373
        %v375 = vrot.slane %v374, 1
        %v376 = vadd.f32 %v374, %v375
        %v377 = vadd.f32 %v349, %v352
        %v378 = vrot.slane %v377, 4
        %v379 = vadd.f32 %v377, %v378
        %v380 = vrot.slane %v379, 2
        %v381 = vadd.f32 %v379, %v380
        %v382 = vrot.slane %v381, 1
        %v383 = vadd.f32 %v381, %v382
        %v384 = vadd.f32 %v357, %v360
        %v385 = vrot.slane %v384, 4
        %v386 = vadd.f32 %v384, %v385
        %v387 = vrot.slane %v386, 2
        %v388 = vadd.f32 %v386, %v387
        %v389 = vrot.slane %v388, 1
        %v390 = vadd.f32 %v388, %v389
        %v391 = vmul.f32 %v333, %v333
        %v392 = vmul.f32 %v336, %v336
        %v393 = vmul.f32 %v341, %v341
        %v394 = vmul.f32 %v344, %v344
        %v395 = vmul.f32 %v349, %v349
        %v396 = vmul.f32 %v352, %v352
        %v397 = vmul.f32 %v357, %v357
        %v398 = vmul.f32 %v360, %v360
        %v399 = vadd.f32 %v391, %v392
        %v400 = vrot.slane %v399, 4
        %v401 = vadd.f32 %v399, %v400
        %v402 = vrot.slane %v401, 2
        %v403 = vadd.f32 %v401, %v402
        %v404 = vrot.slane %v403, 1
        %v405 = vadd.f32 %v403, %v404
        %v406 = vadd.f32 %v393, %v394
        %v407 = vrot.slane %v406, 4
        %v408 = vadd.f32 %v406, %v407
        %v409 = vrot.slane %v408, 2
        %v410 = vadd.f32 %v408, %v409
        %v411 = vrot.slane %v410, 1
        %v412 = vadd.f32 %v410, %v411
        %v413 = vadd.f32 %v395, %v396
        %v414 = vrot.slane %v413, 4
        %v415 = vadd.f32 %v413, %v414
        %v416 = vrot.slane %v415, 2
        %v417 = vadd.f32 %v415, %v416
        %v418 = vrot.slane %v417, 1
        %v419 = vadd.f32 %v417, %v418
        %v420 = vadd.f32 %v397, %v398
        %v421 = vrot.slane %v420, 4
        %v422 = vadd.f32 %v420, %v421
        %v423 = vrot.slane %v422, 2
        %v424 = vadd.f32 %v422, %v423
        %v425 = vrot.slane %v424, 1
        %v426 = vadd.f32 %v424, %v425
        %vm431 = vcmask 1041409
        %v432 = vsel %vm431, %v376, %v369
        %vm433 = vcmask 1042434
        %v434 = vsel %vm433, %v383, %v432
        %vm435 = vcmask 1043459
        %v436 = vsel %vm435, %v390, %v434
        %vm442 = vcmask 1045509
        %v443 = vsel %vm442, %v412, %v405
        %vm444 = vcmask 1046534
        %v445 = vsel %vm444, %v419, %v443
        %vm446 = vcmask 1047559
        %v447 = vsel %vm446, %v426, %v445
        %vm449 = vcmask 1043456
        %v450 = vsel %vm449, %v436, %v447
        %451 = vrot.lane.b32.xlu0 %v450, 8
        %v452 = vpop.permute.xlu0 %451
        %v453 = vadd.f32 %v450, %v452
        %454 = vrot.lane.b32.xlu0 %v453, 16
        %v455 = vpop.permute.xlu0 %454
        %v456 = vadd.f32 %v453, %v455
        %457 = vrot.lane.b32.xlu0 %v456, 32
        %v458 = vpop.permute.xlu0 %457
        %v459 = vadd.f32 %v456, %v458
        %460 = vrot.lane.b32.xlu0 %v459, 64
        %v461 = vpop.permute.xlu0 %460
        %v462 = vadd.f32 %v459, %v461
        %v463 = vmul.f32 %v462, 0.00390625
        %v464 = vmul.f32 %v463, %v463
        %v466 = vrot.slane %v464, 4
        %v468 = vsub.f32 %v463, %v466
        %v469 = vmax.f32 %v468, 0.0
        %v470 = vadd.f32 %v469, 1e-05
        %v471 = vrsqrt.pop %v470
        %v474 = vunpack.c.l.s4 1966171168
        %v475 = vunpack.c.0.s8 %v474
        %v476 = vlaneseq
        %v477 = vshrl.u32 %v476, 7
        %v478 = vsub.s32 %v475, %v477
        %v479 = vrot.slane %v463, %v478
        %v480 = vcombine.high %v479, %v479
        %v482 = vunpack.c.l.s4 1966171168
        %v483 = vunpack.c.0.s8 %v482
        %v484 = vlaneseq
        %v485 = vshrl.u32 %v484, 7
        %v486 = vsub.s32 %v483, %v485
        %v487 = vrot.slane %v479, %v486
        %v489 = vunpack.c.l.s4 1966171168
        %v490 = vunpack.c.0.s8 %v489
        %v491 = vlaneseq
        %v492 = vshrl.u32 %v491, 7
        %v493 = vsub.s32 %v490, %v492
        %v494 = vrot.slane %v480, %v493
        %v495 = vcombine.high %v487, %v487
        %v496 = vcombine.high %v494, %v494
        %v497 = vlaneseq
        %v498 = vshrl.u32 %v497, 7
        %v499 = vsub.s32 0, %v498
        %v500 = vrot.slane %v487, %v499
        %v501 = vlaneseq
        %v502 = vshrl.u32 %v501, 7
        %v503 = vsub.s32 0, %v502
        %v504 = vrot.slane %v494, %v503
        %v505 = vlaneseq
        %v506 = vshrl.u32 %v505, 7
        %v507 = vsub.s32 0, %v506
        %v508 = vrot.slane %v495, %v507
        %v509 = vlaneseq
        %v510 = vshrl.u32 %v509, 7
        %v511 = vsub.s32 0, %v510
        %v512 = vrot.slane %v496, %v511
        %v517 = vsub.f32 %v333, %v500
        %v518 = vsub.f32 %v336, %v500
        %v519 = vsub.f32 %v341, %v504
        %v520 = vsub.f32 %v344, %v504
        %v521 = vsub.f32 %v349, %v508
        %v522 = vsub.f32 %v352, %v508
        %v523 = vsub.f32 %v357, %v512
        %v524 = vsub.f32 %v360, %v512
        %v526 = vcombine.high %v471, %v471
        %v528 = vunpack.c.l.s4 1966171168
        %v529 = vunpack.c.0.s8 %v528
        %v530 = vlaneseq
        %v531 = vshrl.u32 %v530, 7
        %v532 = vsub.s32 %v529, %v531
        %v533 = vrot.slane %v526, %v532
        %v534 = vcombine.high %v533, %v533
        %v536 = vunpack.c.l.s4 1966171168
        %v537 = vunpack.c.0.s8 %v536
        %v538 = vlaneseq
        %v539 = vshrl.u32 %v538, 7
        %v540 = vsub.s32 %v537, %v539
        %v541 = vrot.slane %v533, %v540
        %v543 = vunpack.c.l.s4 1966171168
        %v544 = vunpack.c.0.s8 %v543
        %v545 = vlaneseq
        %v546 = vshrl.u32 %v545, 7
        %v547 = vsub.s32 %v544, %v546
        %v548 = vrot.slane %v534, %v547
        %v549 = vcombine.high %v541, %v541
        %v550 = vcombine.high %v548, %v548
        %v551 = vlaneseq
        %v552 = vshrl.u32 %v551, 7
        %v553 = vsub.s32 0, %v552
        %v554 = vrot.slane %v541, %v553
        %v555 = vlaneseq
        %v556 = vshrl.u32 %v555, 7
        %v557 = vsub.s32 0, %v556
        %v558 = vrot.slane %v548, %v557
        %v559 = vlaneseq
        %v560 = vshrl.u32 %v559, 7
        %v561 = vsub.s32 0, %v560
        %v562 = vrot.slane %v549, %v561
        %v563 = vlaneseq
        %v564 = vshrl.u32 %v563, 7
        %v565 = vsub.s32 0, %v564
        %v566 = vrot.slane %v550, %v565
        %v571 = vmul.f32 %v517, %v554
        %v572 = vmul.f32 %v518, %v554
        %v573 = vmul.f32 %v519, %v558
        %v574 = vmul.f32 %v520, %v558
        %v575 = vmul.f32 %v521, %v562
        %v576 = vmul.f32 %v522, %v562
        %v577 = vmul.f32 %v523, %v566
        %v578 = vmul.f32 %v524, %v566
        %v579 = vmax.f32 %v571, 0.0
        %v580 = vmax.f32 %v572, 0.0
        %v581 = vmax.f32 %v573, 0.0
        %v582 = vmax.f32 %v574, 0.0
        %v583 = vmax.f32 %v575, 0.0
        %v584 = vmax.f32 %v576, 0.0
        %v585 = vmax.f32 %v577, 0.0
        %v586 = vmax.f32 %v578, 0.0
        %v587 = vlaneseq
        %v588 = vshrl.u32 %v587, 7
        %v589 = vadd.s32 %v588, 8
        %vm590 = vcmp.eq.s32.totalorder %v588, 0
        %vm591 = vcmp.eq.s32.totalorder %v589, 0
        %v592 = vrot.slane %v579, 7
        %v593 = vrot.slane %v580, 7
        %v594 = vrot.slane %v581, 7
        %v595 = vrot.slane %v582, 7
        %v596 = vrot.slane %v583, 7
        %v597 = vrot.slane %v584, 7
        %v598 = vrot.slane %v585, 7
        %v599 = vrot.slane %v586, 7
        %vm600 = vcmp.lt.s32.totalorder %v588, 1
        %v601 = vsel %vm600, %v598, %v599
        %v602 = vsel %vm600, %v597, %v598
        %v603 = vsel %vm600, %v596, %v597
        %v604 = vsel %vm600, %v595, %v596
        %v605 = vsel %vm600, %v594, %v595
        %v606 = vsel %vm600, %v593, %v594
        %v607 = vsel %vm600, %v592, %v593
        %v608 = vsel %vm600, %v599, %v592
        %v609 = vsel %vm590, 0.0, %v608
        %v610 = vsel %vm591, 0.0, %v607
        %v611 = vsel %vm590, 0.0, %v606
        %v612 = vsel %vm591, 0.0, %v605
        %v613 = vsel %vm590, 0.0, %v604
        %v614 = vsel %vm591, 0.0, %v603
        %v615 = vsel %vm590, 0.0, %v602
        %v616 = vsel %vm591, 0.0, %v601
        %vm617 = vcmp.eq.s32.totalorder %v588, 15
        %vm618 = vcmp.eq.s32.totalorder %v589, 15
        %v619 = vrot.slane %v579, 1
        %v620 = vrot.slane %v580, 1
        %v621 = vrot.slane %v581, 1
        %v622 = vrot.slane %v582, 1
        %v623 = vrot.slane %v583, 1
        %v624 = vrot.slane %v584, 1
        %v625 = vrot.slane %v585, 1
        %v626 = vrot.slane %v586, 1
        %vm627 = vcmp.lt.s32.totalorder %v588, 7
        %v628 = vsel %vm627, %v625, %v626
        %v629 = vsel %vm627, %v624, %v625
        %v630 = vsel %vm627, %v623, %v624
        %v631 = vsel %vm627, %v622, %v623
        %v632 = vsel %vm627, %v621, %v622
        %v633 = vsel %vm627, %v620, %v621
        %v634 = vsel %vm627, %v619, %v620
        %v635 = vsel %vm627, %v626, %v619
        %v636 = vsel %vm617, 0.0, %v634
        %v637 = vsel %vm618, 0.0, %v633
        %v638 = vsel %vm617, 0.0, %v632
        %v639 = vsel %vm618, 0.0, %v631
        %v640 = vsel %vm617, 0.0, %v630
        %v641 = vsel %vm618, 0.0, %v629
        %v642 = vsel %vm617, 0.0, %v628
        %v643 = vsel %vm618, 0.0, %v635
        %v644 = vpack.c.bf16 %v610, %v609
        %v645 = vpack.c.bf16 %v612, %v611
        %v646 = vpack.c.bf16 %v614, %v613
        %v647 = vpack.c.bf16 %v616, %v615
        %v648 = vpack.c.bf16 %v580, %v579
        %v649 = vpack.c.bf16 %v582, %v581
        %v650 = vpack.c.bf16 %v584, %v583
        %v651 = vpack.c.bf16 %v586, %v585
        %v652 = vpack.c.bf16 %v637, %v636
        %v653 = vpack.c.bf16 %v639, %v638
        %v654 = vpack.c.bf16 %v641, %v640
        %v655 = vpack.c.bf16 %v643, %v642
        %v656 = vld [vmem:[#allocation7] sm:$0xf]
        %v657 = vld [vmem:[#allocation7 + $0x4] sm:$0xf]
        %v658 = vld [vmem:[#allocation7 + $0x8] sm:$0xf]
        %v659 = vld [vmem:[#allocation7 + $0xc] sm:$0xf]
        %v660 = vld [vmem:[#allocation7 + $0x10] sm:$0xf]
        %v661 = vld [vmem:[#allocation7 + $0x14] sm:$0xf]
        %v662 = vld [vmem:[#allocation7 + $0x18] sm:$0xf]
        %v663 = vld [vmem:[#allocation7 + $0x1c] sm:$0xf]
        %v664 = vld [vmem:[#allocation7 + $0x20] sm:$0xf]
        %v665 = vld [vmem:[#allocation7 + $0x24] sm:$0xf]
        %v666 = vld [vmem:[#allocation7 + $0x28] sm:$0xf]
        %v667 = vld [vmem:[#allocation7 + $0x2c] sm:$0xf]
        %v668 = vld [vmem:[#allocation7 + $0x30] sm:$0xf]
        %v669 = vld [vmem:[#allocation7 + $0x34] sm:$0xf]
        %v670 = vld [vmem:[#allocation7 + $0x38] sm:$0xf]
        %v671 = vld [vmem:[#allocation7 + $0x3c] sm:$0xf]
        %v672 = vld [vmem:[#allocation7 + $0x40] sm:$0xf]
        %v673 = vld [vmem:[#allocation7 + $0x44] sm:$0xf]
        %v674 = vld [vmem:[#allocation7 + $0x48] sm:$0xf]
        %v675 = vld [vmem:[#allocation7 + $0x4c] sm:$0xf]
        %v676 = vld [vmem:[#allocation7 + $0x50] sm:$0xf]
        %v677 = vld [vmem:[#allocation7 + $0x54] sm:$0xf]
        %v678 = vld [vmem:[#allocation7 + $0x58] sm:$0xf]
        %v679 = vld [vmem:[#allocation7 + $0x5c] sm:$0xf]
        %v680 = vld [vmem:[#allocation7 + $0x60] sm:$0xf]
        %v681 = vld [vmem:[#allocation7 + $0x64] sm:$0xf]
        %v682 = vld [vmem:[#allocation7 + $0x68] sm:$0xf]
        %v683 = vld [vmem:[#allocation7 + $0x6c] sm:$0xf]
        %v684 = vld [vmem:[#allocation7 + $0x70] sm:$0xf]
        %v685 = vld [vmem:[#allocation7 + $0x74] sm:$0xf]
        %v686 = vld [vmem:[#allocation7 + $0x78] sm:$0xf]
        %v687 = vld [vmem:[#allocation7 + $0x7c] sm:$0xf]
        %v688 = vld [vmem:[#allocation7 + $0x80] sm:$0xf]
        %v689 = vld [vmem:[#allocation7 + $0x84] sm:$0xf]
        %v690 = vld [vmem:[#allocation7 + $0x88] sm:$0xf]
        %v691 = vld [vmem:[#allocation7 + $0x8c] sm:$0xf]
        %v692 = vld [vmem:[#allocation7 + $0x90] sm:$0xf]
        %v693 = vld [vmem:[#allocation7 + $0x94] sm:$0xf]
        %v694 = vld [vmem:[#allocation7 + $0x98] sm:$0xf]
        %v695 = vld [vmem:[#allocation7 + $0x9c] sm:$0xf]
        %v696 = vld [vmem:[#allocation7 + $0xa0] sm:$0xf]
        %v697 = vld [vmem:[#allocation7 + $0xa4] sm:$0xf]
        %v698 = vld [vmem:[#allocation7 + $0xa8] sm:$0xf]
        %v699 = vld [vmem:[#allocation7 + $0xac] sm:$0xf]
        %v700 = vld [vmem:[#allocation7 + $0xb0] sm:$0xf]
        %v701 = vld [vmem:[#allocation7 + $0xb4] sm:$0xf]
        %v702 = vld [vmem:[#allocation7 + $0xb8] sm:$0xf]
        %v703 = vld [vmem:[#allocation7 + $0xbc] sm:$0xf]
        %v752 = vunpack.c.l.b16 %v656
        %v753 = vunpack.c.l.b16 %v657
        %v754 = vunpack.c.l.b16 %v658
        %v755 = vunpack.c.l.b16 %v659
        %v756 = vunpack.c.l.b16 %v660
        %v757 = vunpack.c.l.b16 %v661
        %v758 = vunpack.c.l.b16 %v662
        %v759 = vunpack.c.l.b16 %v663
        %v760 = vunpack.c.l.b16 %v664
        %v761 = vunpack.c.l.b16 %v665
        %v762 = vunpack.c.l.b16 %v666
        %v763 = vunpack.c.l.b16 %v667
        %v764 = vunpack.c.l.b16 %v668
        %v765 = vunpack.c.l.b16 %v669
        %v766 = vunpack.c.l.b16 %v670
        %v767 = vunpack.c.l.b16 %v671
        %v768 = vunpack.c.l.b16 %v672
        %v769 = vunpack.c.l.b16 %v673
        %v770 = vunpack.c.l.b16 %v674
        %v771 = vunpack.c.l.b16 %v675
        %v772 = vunpack.c.l.b16 %v676
        %v773 = vunpack.c.l.b16 %v677
        %v774 = vunpack.c.l.b16 %v678
        %v775 = vunpack.c.l.b16 %v679
        %v776 = vunpack.c.l.b16 %v680
        %v777 = vunpack.c.l.b16 %v681
        %v778 = vunpack.c.l.b16 %v682
        %v779 = vunpack.c.l.b16 %v683
        %v780 = vunpack.c.l.b16 %v684
        %v781 = vunpack.c.l.b16 %v685
        %v782 = vunpack.c.l.b16 %v686
        %v783 = vunpack.c.l.b16 %v687
        %v784 = vunpack.c.l.b16 %v688
        %v785 = vunpack.c.l.b16 %v689
        %v786 = vunpack.c.l.b16 %v690
        %v787 = vunpack.c.l.b16 %v691
        %v788 = vunpack.c.l.b16 %v692
        %v789 = vunpack.c.l.b16 %v693
        %v790 = vunpack.c.l.b16 %v694
        %v791 = vunpack.c.l.b16 %v695
        %v792 = vunpack.c.l.b16 %v696
        %v793 = vunpack.c.l.b16 %v697
        %v794 = vunpack.c.l.b16 %v698
        %v795 = vunpack.c.l.b16 %v699
        %v796 = vunpack.c.l.b16 %v700
        %v797 = vunpack.c.l.b16 %v701
        %v798 = vunpack.c.l.b16 %v702
        %v799 = vunpack.c.l.b16 %v703
        %v800 = vpack.c.b16 %v753, %v752
        %v801 = vpack.c.b16 %v755, %v754
        %v802 = vpack.c.b16 %v757, %v756
        %v803 = vpack.c.b16 %v759, %v758
        %v804 = vpack.c.b16 %v761, %v760
        %v805 = vpack.c.b16 %v763, %v762
        %v806 = vpack.c.b16 %v765, %v764
        %v807 = vpack.c.b16 %v767, %v766
        %v808 = vpack.c.b16 %v769, %v768
        %v809 = vpack.c.b16 %v771, %v770
        %v810 = vpack.c.b16 %v773, %v772
        %v811 = vpack.c.b16 %v775, %v774
        %v812 = vpack.c.b16 %v777, %v776
        %v813 = vpack.c.b16 %v779, %v778
        %v814 = vpack.c.b16 %v781, %v780
        %v815 = vpack.c.b16 %v783, %v782
        %v816 = vpack.c.b16 %v785, %v784
        %v817 = vpack.c.b16 %v787, %v786
        %v818 = vpack.c.b16 %v789, %v788
        %v819 = vpack.c.b16 %v791, %v790
        %v820 = vpack.c.b16 %v793, %v792
        %v821 = vpack.c.b16 %v795, %v794
        %v822 = vpack.c.b16 %v797, %v796
        %v823 = vpack.c.b16 %v799, %v798
        %848 = vmatprep.subr.bf16.mxu0 0
        %849 = vmatpush1.bf16.msra.mxu0 %v807
        %850 = vmatprep.subr.bf16.mxu0 0
        %851 = vmatpush1.bf16.msra.mxu0 %v806
        %852 = vmatprep.subr.bf16.mxu0 0
        %853 = vmatpush1.bf16.msra.mxu0 %v805
        %854 = vmatprep.subr.bf16.mxu0 0
        %855 = vmatpush1.bf16.msra.mxu0 %v804
        %856 = vmatprep.subr.bf16.mxu0 0
        %857 = vmatpush1.bf16.msra.mxu0 %v803
        %858 = vmatprep.subr.bf16.mxu0 0
        %859 = vmatpush1.bf16.msra.mxu0 %v802
        %860 = vmatprep.subr.bf16.mxu0 0
        %861 = vmatpush1.bf16.msra.mxu0 %v801
        %862 = vmatprep.subr.bf16.mxu0 0
        %863 = vmatpush1.bf16.msra.mxu0 %v800
        %864 = vmatprep.subr.bf16.mxu0 0
        %865 = vmatpush2.bf16.msra.mxu0 %v815
        %866 = vmatprep.subr.bf16.mxu0 0
        %867 = vmatpush2.bf16.msra.mxu0 %v814
        %868 = vmatprep.subr.bf16.mxu0 0
        %869 = vmatpush2.bf16.msra.mxu0 %v813
        %870 = vmatprep.subr.bf16.mxu0 0
        %871 = vmatpush2.bf16.msra.mxu0 %v812
        %872 = vmatprep.subr.bf16.mxu0 0
        %873 = vmatpush2.bf16.msra.mxu0 %v811
        %874 = vmatprep.subr.bf16.mxu0 0
        %875 = vmatpush2.bf16.msra.mxu0 %v810
        %876 = vmatprep.subr.bf16.mxu0 0
        %877 = vmatpush2.bf16.msra.mxu0 %v809
        %878 = vmatprep.subr.bf16.mxu0 0
        %879 = vmatpush2.bf16.msra.mxu0 %v808
        %880 = vmatprep.mubr.bf16.mxu0 %v648
        %881 = vmatmul.mubr.bf16.gmra.mxu0 %v644
        %v882 = vpop.f32.mrf.mxu0
        %v883 = vadd.f32 0.0, %v882
        %v884 = vpop.f32.mrf.mxu0
        %v885 = vpop.f32.mrf.mxu0
        %v886 = vadd.f32 0.0, %v885
        %v887 = vpop.f32.mrf.mxu0
        %888 = vmatprep.mubr.bf16.mxu0 %v649
        %889 = vmatmul.mubr.bf16.gmra.mxu0 %v645
        %v890 = vpop.f32.mrf.mxu0
        %v891 = vadd.f32 0.0, %v890
        %v892 = vpop.f32.mrf.mxu0
        %v893 = vpop.f32.mrf.mxu0
        %v894 = vadd.f32 0.0, %v893
        %v895 = vpop.f32.mrf.mxu0
        %896 = vmatprep.mubr.bf16.mxu0 %v650
        %897 = vmatmul.mubr.bf16.gmra.mxu0 %v646
        %v898 = vpop.f32.mrf.mxu0
        %v899 = vadd.f32 0.0, %v898
        %v900 = vpop.f32.mrf.mxu0
        %v901 = vpop.f32.mrf.mxu0
        %v902 = vadd.f32 0.0, %v901
        %v903 = vpop.f32.mrf.mxu0
        %904 = vmatprep.mubr.bf16.mxu0 %v651
        %905 = vmatmul.mubr.bf16.gmra.mxu0 %v647
        %v906 = vpop.f32.mrf.mxu0
        %v907 = vadd.f32 0.0, %v906
        %v908 = vpop.f32.mrf.mxu0
        %v909 = vpop.f32.mrf.mxu0
        %v910 = vadd.f32 0.0, %v909
        %v911 = vpop.f32.mrf.mxu0
        %912 = vdwg.mxu0
        %913 = vmatprep.subr.bf16.mxu0 0
        %914 = vmatpush1.bf16.msra.mxu0 %v823
        %915 = vmatprep.subr.bf16.mxu0 0
        %916 = vmatpush1.bf16.msra.mxu0 %v822
        %917 = vmatprep.subr.bf16.mxu0 0
        %918 = vmatpush1.bf16.msra.mxu0 %v821
        %919 = vmatprep.subr.bf16.mxu0 0
        %920 = vmatpush1.bf16.msra.mxu0 %v820
        %921 = vmatprep.subr.bf16.mxu0 0
        %922 = vmatpush1.bf16.msra.mxu0 %v819
        %923 = vmatprep.subr.bf16.mxu0 0
        %924 = vmatpush1.bf16.msra.mxu0 %v818
        %925 = vmatprep.subr.bf16.mxu0 0
        %926 = vmatpush1.bf16.msra.mxu0 %v817
        %927 = vmatprep.subr.bf16.mxu0 0
        %928 = vmatpush1.bf16.msra.mxu0 %v816
        %929 = vmatprep.subr.bf16.mxu0 0
        %930 = vmatpush2.bf16.msra.mxu0 0
        %931 = vmatprep.subr.bf16.mxu0 0
        %932 = vmatpush2.bf16.msra.mxu0 0
        %933 = vmatprep.subr.bf16.mxu0 0
        %934 = vmatpush2.bf16.msra.mxu0 0
        %935 = vmatprep.subr.bf16.mxu0 0
        %936 = vmatpush2.bf16.msra.mxu0 0
        %937 = vmatprep.subr.bf16.mxu0 0
        %938 = vmatpush2.bf16.msra.mxu0 0
        %939 = vmatprep.subr.bf16.mxu0 0
        %940 = vmatpush2.bf16.msra.mxu0 0
        %941 = vmatprep.subr.bf16.mxu0 0
        %942 = vmatpush2.bf16.msra.mxu0 0
        %943 = vmatprep.subr.bf16.mxu0 0
        %944 = vmatpush2.bf16.msra.mxu0 0
        %945 = vmatprep.mubr.bf16.mxu0 0
        %946 = vmatmul.mubr.bf16.gmra.mxu0 %v652
        %v947 = vpop.f32.mrf.mxu0
        %v948 = vadd.f32 %v883, %v947
        %v949 = vpop.f32.mrf.mxu0
        %v950 = vpop.f32.mrf.mxu0
        %v951 = vadd.f32 %v886, %v950
        %v952 = vpop.f32.mrf.mxu0
        %953 = vmatprep.mubr.bf16.mxu0 0
        %954 = vmatmul.mubr.bf16.gmra.mxu0 %v653
        %v955 = vpop.f32.mrf.mxu0
        %v956 = vadd.f32 %v891, %v955
        %v957 = vpop.f32.mrf.mxu0
        %v958 = vpop.f32.mrf.mxu0
        %v959 = vadd.f32 %v894, %v958
        %v960 = vpop.f32.mrf.mxu0
        %961 = vmatprep.mubr.bf16.mxu0 0
        %962 = vmatmul.mubr.bf16.gmra.mxu0 %v654
        %v963 = vpop.f32.mrf.mxu0
        %v964 = vadd.f32 %v899, %v963
        %v965 = vpop.f32.mrf.mxu0
        %v966 = vpop.f32.mrf.mxu0
        %v967 = vadd.f32 %v902, %v966
        %v968 = vpop.f32.mrf.mxu0
        %969 = vmatprep.mubr.bf16.mxu0 0
        %970 = vmatmul.mubr.bf16.gmra.mxu0 %v655
        %v971 = vpop.f32.mrf.mxu0
        %v972 = vadd.f32 %v907, %v971
        %v973 = vpop.f32.mrf.mxu0
        %v974 = vpop.f32.mrf.mxu0
        %v975 = vadd.f32 %v910, %v974
        %v976 = vpop.f32.mrf.mxu0
        %977 = vdwg.mxu0
        %v978 = vadd.f32 %v948, %v951
        %v979 = vrot.slane %v978, 4
        %v980 = vadd.f32 %v978, %v979
        %v981 = vrot.slane %v980, 2
        %v982 = vadd.f32 %v980, %v981
        %v983 = vrot.slane %v982, 1
        %v984 = vadd.f32 %v982, %v983
        %v985 = vadd.f32 %v956, %v959
        %v986 = vrot.slane %v985, 4
        %v987 = vadd.f32 %v985, %v986
        %v988 = vrot.slane %v987, 2
        %v989 = vadd.f32 %v987, %v988
        %v990 = vrot.slane %v989, 1
        %v991 = vadd.f32 %v989, %v990
        %v992 = vadd.f32 %v964, %v967
        %v993 = vrot.slane %v992, 4
        %v994 = vadd.f32 %v992, %v993
        %v995 = vrot.slane %v994, 2
        %v996 = vadd.f32 %v994, %v995
        %v997 = vrot.slane %v996, 1
        %v998 = vadd.f32 %v996, %v997
        %v999 = vadd.f32 %v972, %v975
        %v1000 = vrot.slane %v999, 4
        %v1001 = vadd.f32 %v999, %v1000
        %v1002 = vrot.slane %v1001, 2
        %v1003 = vadd.f32 %v1001, %v1002
        %v1004 = vrot.slane %v1003, 1
        %v1005 = vadd.f32 %v1003, %v1004
        %v1006 = vmul.f32 %v948, %v948
        %v1007 = vmul.f32 %v951, %v951
        %v1008 = vmul.f32 %v956, %v956
        %v1009 = vmul.f32 %v959, %v959
        %v1010 = vmul.f32 %v964, %v964
        %v1011 = vmul.f32 %v967, %v967
        %v1012 = vmul.f32 %v972, %v972
        %v1013 = vmul.f32 %v975, %v975
        %v1014 = vadd.f32 %v1006, %v1007
        %v1015 = vrot.slane %v1014, 4
        %v1016 = vadd.f32 %v1014, %v1015
        %v1017 = vrot.slane %v1016, 2
        %v1018 = vadd.f32 %v1016, %v1017
        %v1019 = vrot.slane %v1018, 1
        %v1020 = vadd.f32 %v1018, %v1019
        %v1021 = vadd.f32 %v1008, %v1009
        %v1022 = vrot.slane %v1021, 4
        %v1023 = vadd.f32 %v1021, %v1022
        %v1024 = vrot.slane %v1023, 2
        %v1025 = vadd.f32 %v1023, %v1024
        %v1026 = vrot.slane %v1025, 1
        %v1027 = vadd.f32 %v1025, %v1026
        %v1028 = vadd.f32 %v1010, %v1011
        %v1029 = vrot.slane %v1028, 4
        %v1030 = vadd.f32 %v1028, %v1029
        %v1031 = vrot.slane %v1030, 2
        %v1032 = vadd.f32 %v1030, %v1031
        %v1033 = vrot.slane %v1032, 1
        %v1034 = vadd.f32 %v1032, %v1033
        %v1035 = vadd.f32 %v1012, %v1013
        %v1036 = vrot.slane %v1035, 4
        %v1037 = vadd.f32 %v1035, %v1036
        %v1038 = vrot.slane %v1037, 2
        %v1039 = vadd.f32 %v1037, %v1038
        %v1040 = vrot.slane %v1039, 1
        %v1041 = vadd.f32 %v1039, %v1040
        %v1046 = vsel %vm431, %v991, %v984
        %v1047 = vsel %vm433, %v998, %v1046
        %v1048 = vsel %vm435, %v1005, %v1047
        %v1054 = vsel %vm442, %v1027, %v1020
        %v1055 = vsel %vm444, %v1034, %v1054
        %v1056 = vsel %vm446, %v1041, %v1055
        %v1058 = vsel %vm449, %v1048, %v1056
        %1059 = vrot.lane.b32.xlu0 %v1058, 8
        %v1060 = vpop.permute.xlu0 %1059
        %v1061 = vadd.f32 %v1058, %v1060
        %1062 = vrot.lane.b32.xlu0 %v1061, 16
        %v1063 = vpop.permute.xlu0 %1062
        %v1064 = vadd.f32 %v1061, %v1063
        %1065 = vrot.lane.b32.xlu0 %v1064, 32
        %v1066 = vpop.permute.xlu0 %1065
        %v1067 = vadd.f32 %v1064, %v1066
        %1068 = vrot.lane.b32.xlu0 %v1067, 64
        %v1069 = vpop.permute.xlu0 %1068
        %v1070 = vadd.f32 %v1067, %v1069
        %v1071 = vmul.f32 %v1070, 0.00390625
        %v1072 = vmul.f32 %v1071, %v1071
        %v1074 = vrot.slane %v1072, 4
        %v1076 = vsub.f32 %v1071, %v1074
        %v1077 = vmax.f32 %v1076, 0.0
        %v1078 = vadd.f32 %v1077, 1e-05
        %v1079 = vrsqrt.pop %v1078
        %v1082 = vunpack.c.l.s4 1966171168
        %v1083 = vunpack.c.0.s8 %v1082
        %v1084 = vlaneseq
        %v1085 = vshrl.u32 %v1084, 7
        %v1086 = vsub.s32 %v1083, %v1085
        %v1087 = vrot.slane %v1071, %v1086
        %v1088 = vcombine.high %v1087, %v1087
        %v1090 = vunpack.c.l.s4 1966171168
        %v1091 = vunpack.c.0.s8 %v1090
        %v1092 = vlaneseq
        %v1093 = vshrl.u32 %v1092, 7
        %v1094 = vsub.s32 %v1091, %v1093
        %v1095 = vrot.slane %v1087, %v1094
        %v1097 = vunpack.c.l.s4 1966171168
        %v1098 = vunpack.c.0.s8 %v1097
        %v1099 = vlaneseq
        %v1100 = vshrl.u32 %v1099, 7
        %v1101 = vsub.s32 %v1098, %v1100
        %v1102 = vrot.slane %v1088, %v1101
        %v1103 = vcombine.high %v1095, %v1095
        %v1104 = vcombine.high %v1102, %v1102
        %v1105 = vlaneseq
        %v1106 = vshrl.u32 %v1105, 7
        %v1107 = vsub.s32 0, %v1106
        %v1108 = vrot.slane %v1095, %v1107
        %v1109 = vlaneseq
        %v1110 = vshrl.u32 %v1109, 7
        %v1111 = vsub.s32 0, %v1110
        %v1112 = vrot.slane %v1102, %v1111
        %v1113 = vlaneseq
        %v1114 = vshrl.u32 %v1113, 7
        %v1115 = vsub.s32 0, %v1114
        %v1116 = vrot.slane %v1103, %v1115
        %v1117 = vlaneseq
        %v1118 = vshrl.u32 %v1117, 7
        %v1119 = vsub.s32 0, %v1118
        %v1120 = vrot.slane %v1104, %v1119
        %v1125 = vsub.f32 %v948, %v1108
        %v1126 = vsub.f32 %v951, %v1108
        %v1127 = vsub.f32 %v956, %v1112
        %v1128 = vsub.f32 %v959, %v1112
        %v1129 = vsub.f32 %v964, %v1116
        %v1130 = vsub.f32 %v967, %v1116
        %v1131 = vsub.f32 %v972, %v1120
        %v1132 = vsub.f32 %v975, %v1120
        %v1134 = vcombine.high %v1079, %v1079
        %v1136 = vunpack.c.l.s4 1966171168
        %v1137 = vunpack.c.0.s8 %v1136
        %v1138 = vlaneseq
        %v1139 = vshrl.u32 %v1138, 7
        %v1140 = vsub.s32 %v1137, %v1139
        %v1141 = vrot.slane %v1134, %v1140
        %v1142 = vcombine.high %v1141, %v1141
        %v1144 = vunpack.c.l.s4 1966171168
        %v1145 = vunpack.c.0.s8 %v1144
        %v1146 = vlaneseq
        %v1147 = vshrl.u32 %v1146, 7
        %v1148 = vsub.s32 %v1145, %v1147
        %v1149 = vrot.slane %v1141, %v1148
        %v1151 = vunpack.c.l.s4 1966171168
        %v1152 = vunpack.c.0.s8 %v1151
        %v1153 = vlaneseq
        %v1154 = vshrl.u32 %v1153, 7
        %v1155 = vsub.s32 %v1152, %v1154
        %v1156 = vrot.slane %v1142, %v1155
        %v1157 = vcombine.high %v1149, %v1149
        %v1158 = vcombine.high %v1156, %v1156
        %v1159 = vlaneseq
        %v1160 = vshrl.u32 %v1159, 7
        %v1161 = vsub.s32 0, %v1160
        %v1162 = vrot.slane %v1149, %v1161
        %v1163 = vlaneseq
        %v1164 = vshrl.u32 %v1163, 7
        %v1165 = vsub.s32 0, %v1164
        %v1166 = vrot.slane %v1156, %v1165
        %v1167 = vlaneseq
        %v1168 = vshrl.u32 %v1167, 7
        %v1169 = vsub.s32 0, %v1168
        %v1170 = vrot.slane %v1157, %v1169
        %v1171 = vlaneseq
        %v1172 = vshrl.u32 %v1171, 7
        %v1173 = vsub.s32 0, %v1172
        %v1174 = vrot.slane %v1158, %v1173
        %v1179 = vmul.f32 %v1125, %v1162
        %v1180 = vmul.f32 %v1126, %v1162
        %v1181 = vmul.f32 %v1127, %v1166
        %v1182 = vmul.f32 %v1128, %v1166
        %v1183 = vmul.f32 %v1129, %v1170
        %v1184 = vmul.f32 %v1130, %v1170
        %v1185 = vmul.f32 %v1131, %v1174
        %v1186 = vmul.f32 %v1132, %v1174
        %v1187 = vmax.f32 %v1179, 0.0
        %v1188 = vmax.f32 %v1180, 0.0
        %v1189 = vmax.f32 %v1181, 0.0
        %v1190 = vmax.f32 %v1182, 0.0
        %v1191 = vmax.f32 %v1183, 0.0
        %v1192 = vmax.f32 %v1184, 0.0
        %v1193 = vmax.f32 %v1185, 0.0
        %v1194 = vmax.f32 %v1186, 0.0
        %v1195 = vadd.f32 %v1187, %v222
        %v1196 = vadd.f32 %v1188, %v223
        %v1197 = vadd.f32 %v1189, %v224
        %v1198 = vadd.f32 %v1190, %v225
        %v1199 = vadd.f32 %v1191, %v226
        %v1200 = vadd.f32 %v1192, %v227
        %v1201 = vadd.f32 %v1193, %v228
        %v1202 = vadd.f32 %v1194, %v229
        %v1203 = vmax.f32 %v1195, 0.0
        %v1204 = vmax.f32 %v1196, 0.0
        %v1205 = vmax.f32 %v1197, 0.0
        %v1206 = vmax.f32 %v1198, 0.0
        %v1207 = vmax.f32 %v1199, 0.0
        %v1208 = vmax.f32 %v1200, 0.0
        %v1209 = vmax.f32 %v1201, 0.0
        %v1210 = vmax.f32 %v1202, 0.0
        %1211 = vst [vmem:[%s218] sm:$0xff] %v1203
        %1212 = vst [vmem:[%s218 + $0x8] sm:$0xff] %v1204
        %1213 = vst [vmem:[%s218 + $0x10] sm:$0xff] %v1205
        %1214 = vst [vmem:[%s218 + $0x18] sm:$0xff] %v1206
        %1215 = vst [vmem:[%s218 + $0x20] sm:$0xff] %v1207
        %1216 = vst [vmem:[%s218 + $0x28] sm:$0xff] %v1208
        %1217 = vst [vmem:[%s218 + $0x30] sm:$0xff] %v1209
        %1218 = vst [vmem:[%s218 + $0x38] sm:$0xff] %v1210
        %s1219 = sand.u32 %s97, 1
        %s1220 = scalar_lea.sflag [#allocation4], %s1219
        %s1221 = sand.u32 %s97, 1
        %s1222 = smul.addr %s1221, 64
        %s1223 = scalar_lea.vmem [#allocation8], %s1222
        // Predicated region
        $region45: #{tpu_custom_call.1} parent=31 // pred_check
          %p1224 = pneg %p107
        $region46: #{tpu_custom_call.1} parent=31 // pred_check_branch
          %1226 = sbr.rel (%p1224) target = $region48
        $region47: #{tpu_custom_call.1} parent=31 // pred_region
          %s1227 = smul.u32 4, %s21
          %s1229 = ssub.s32 1024, 1024
          %1230 = vsyncadd %s1220, %s1229
          %s1231 = smul.addr %s1227, 2
          %s1232 = smul.addr %s1231, 128
          %s1233 = scalar_lea.hbm %s3, %s1232
          %s1234 = sshll.u32 %s1223, 4
          %s1235 = int_to_ptr.vmem [resolvable:$true] %s1234
          %1240 = dma.vmem_to_hbm [thread:$0]  %s1235, 1024, %s1233, %s1220, 128, 128, 8
        $region48: #{tpu_custom_call.1} parent=31 // pred_fallthru
          _
      $region32: #{tpu_custom_call.1} parent=5 // pred_fallthru
        _
      %p1241 = scmp.le.s32.totalorder 2, %s16
      // Predicated region
      $region49: #{tpu_custom_call.1} parent=5 // pred_check
        %p1242 = pneg %p1241
      $region50: #{tpu_custom_call.1} parent=5 // pred_check_branch
        %1244 = sbr.rel (%p1242) target = $region52
      $region51: #{tpu_custom_call.1} parent=5 // pred_region
        %s1245 = ssub.s32 %s16, 2
        // Predicated region
        $region53: #{tpu_custom_call.1} parent=51 // pred_check
          %p1246 = pneg %p113
        $region54: #{tpu_custom_call.1} parent=51 // pred_check_branch
          %1248 = sbr.rel (%p1246) target = $region56
        $region55: #{tpu_custom_call.1} parent=51 // pred_region
          %s1249 = sand.u32 %s98, 1
          %s1250 = scalar_lea.sflag [#allocation4], %s1249
          %s1251 = sand.u32 %s98, 1
          %s1252 = smul.addr %s1251, 64
          %s1253 = scalar_lea.vmem [#allocation8], %s1252
          %1254 = dma.done %s1250, 1024
        $region56: #{tpu_custom_call.1} parent=51 // pred_fallthru
          _
      $region52: #{tpu_custom_call.1} parent=5 // pred_fallthru
        _
    $region6: #{tpu_custom_call.1} parent=1 // loop_footer
      %s20 = sadd.s32 1, %s16
    $region7: #{tpu_custom_call.1} parent=1 // loop_footer_branch
      %15 = sbr.rel target = $region3
    $region8: #{tpu_custom_call.1} parent=1 // loop_exit
      _
    %1255 = vsyncpa [#allocation3], 1
    %s1256 = scalar_lea.sflag [#allocation3], 1
    %1257 = vsyncpa %s1256, 1
    %1258 = vsyncpa [#allocation6], 1
    %1259 = vsyncpa [#allocation4], 1
    %s1260 = scalar_lea.sflag [#allocation4], 1
    %1261 = vsyncpa %s1260, 1

</llo_original>
